<compile_context>
chip_gen: v7x
topology: tpu7x:2x2x1
jax: 0.10.0
libtpu: 0.0.40
codegen_flags: <defaults>
</compile_context>

<pallas_src>
import functools

import numpy as np
import jax
import jax.numpy as jnp
from jax import lax
from jax.experimental import pallas as pl
from jax.experimental.pallas import tpu as pltpu

EPS = 1e-7


def _kitsune_kernel(xg_ref, we_ref, wd_ref, hb_ref, rb_ref, seg_ref,
                    wht_ref, wh_ref, hbh_ref, rbh_ref,
                    tails_ref, head_ref, *, inv_n):
    # xg: (Cp, TB) block-diagonal-packed cluster features, batch on the lane axis.
    xg = xg_ref[...]

    # ---- fused tails: one encode + one decode matmul over the block-diagonal slabs ----
    hidden = jnp.tanh(
        jnp.dot(we_ref[...], xg, preferred_element_type=jnp.float32) + hb_ref[...])      # (Hp, TB)
    recon = jax.nn.sigmoid(
        jnp.dot(wd_ref[...], hidden, preferred_element_type=jnp.float32) + rb_ref[...])  # (Cp, TB)
    diff = recon - xg
    err = jnp.sqrt(diff * diff + EPS)                                                    # (Cp, TB)

    # Segment matrix carries 1/cluster_size and zeros on padded columns -> per-cluster mean
    # as one (tiny) matmul.  HIGHEST precision here keeps the loss reduction f32-exact at
    # negligible MXU cost (the heavy encode/decode above stay DEFAULT precision).
    tails = jnp.dot(seg_ref[...], err, preferred_element_type=jnp.float32,
                    precision=lax.Precision.HIGHEST)                                     # (N, TB)
    tails_ref[...] = tails

    # ---- head autoencoder over per-tail losses, kept in (N, TB) batch-on-lanes layout ----
    hh = jnp.tanh(
        jnp.dot(wht_ref[...], tails, preferred_element_type=jnp.float32) + hbh_ref[...])  # (Hh, TB)
    hrec = jax.nn.sigmoid(
        jnp.dot(wh_ref[...], hh, preferred_element_type=jnp.float32) + rbh_ref[...])      # (N, TB)
    hdiff = hrec - tails
    herr = jnp.sqrt(hdiff * hdiff + EPS)
    head_ref[...] = jnp.sum(herr, axis=0, keepdims=True) * inv_n                          # (1, TB)


def pack_kitsune_params(clusters, tail_params, head_params):
    """Packs per-cluster parameters into block-diagonal slabs. Done ONCE at init."""
    n = len(clusters)
    cpad = max(len(c) for c in clusters)
    hpad = max(np.asarray(w).shape[1] for (w, _, _) in tail_params)
    Cp, Hp = n * cpad, n * hpad

    gather_idx = np.zeros((Cp,), np.int32)
    col_mask = np.zeros((Cp, 1), np.float32)
    We = np.zeros((Hp, Cp), np.float32)        # block-diagonal encoder (W_i^T blocks)
    hb_col = np.zeros((Hp, 1), np.float32)
    rb_col = np.zeros((Cp, 1), np.float32)
    seg = np.zeros((n, Cp), np.float32)        # per-cluster mean; carries 1/cluster_size
    for i, c in enumerate(clusters):
        w_i, hb_i, rb_i = (np.asarray(p, np.float32) for p in tail_params[i])
        ci, hi = w_i.shape
        gather_idx[i * cpad:i * cpad + ci] = np.asarray(c, np.int32)
        col_mask[i * cpad:i * cpad + ci, 0] = 1.0
        We[i * hpad:i * hpad + hi, i * cpad:i * cpad + ci] = w_i.T
        hb_col[i * hpad:i * hpad + hi, 0] = hb_i
        rb_col[i * cpad:i * cpad + ci, 0] = rb_i
        seg[i, i * cpad:i * cpad + ci] = 1.0 / ci
    Wd = np.ascontiguousarray(We.T)            # block-diagonal decoder

    wh, hbh, rbh = (np.asarray(p, np.float32) for p in head_params)
    hh_dim = wh.shape[1]

    return {
        'n': n, 'Cp': Cp, 'Hp': Hp, 'hh': hh_dim,
        'gather_idx': jnp.asarray(gather_idx),
        'col_mask': jnp.asarray(col_mask),
        'We': jnp.asarray(We), 'Wd': jnp.asarray(Wd),
        'hb': jnp.asarray(hb_col), 'rb': jnp.asarray(rb_col),
        'seg': jnp.asarray(seg),
        'wht': jnp.asarray(wh.T), 'wh': jnp.asarray(wh),
        'hbh': jnp.asarray(hbh.reshape(hh_dim, 1)),
        'rbh': jnp.asarray(rbh.reshape(n, 1)),
    }


def kitsune_forward(x, packed, *, batch_tile=128):
    """Runs the Kitsune forward pass. Returns {'tails_losses': (B, N), 'head_loss': (B,)}."""
    x = x.astype(jnp.float32)
    B = x.shape[0]
    n, Cp, Hp, hh = packed['n'], packed['Cp'], packed['Hp'], packed['hh']

    tb = batch_tile                                   # multiple of 128 -> lane-dense stores
    Bp = tb * pl.cdiv(B, tb)

    # Single gather of all cluster columns (padded slots zeroed), then batch goes on lanes.
    xg = jnp.take(x, packed['gather_idx'], axis=1) * packed['col_mask'][:, 0]   # (B, Cp)
    xg_t = xg.T                                                                  # (Cp, B)
    if Bp != B:
        xg_t = jnp.pad(xg_t, ((0, 0), (0, Bp - B)))

    def resident(shape):
        # Full-array block, constant index -> stays VMEM-resident across batch tiles.
        return pl.BlockSpec(shape, lambda i, _nd=len(shape): (0,) * _nd)

    kernel = functools.partial(_kitsune_kernel, inv_n=1.0 / n)
    tails_nb, head_1b = pl.pallas_call(
        kernel,
        out_shape=(jax.ShapeDtypeStruct((n, Bp), jnp.float32),
                   jax.ShapeDtypeStruct((1, Bp), jnp.float32)),
        grid=(Bp // tb,),
        in_specs=[pl.BlockSpec((Cp, tb), lambda i: (0, i)),     # batch-tiled activations
                  resident((Hp, Cp)), resident((Cp, Hp)),       # block-diag encode / decode
                  resident((Hp, 1)), resident((Cp, 1)),         # hidden / reconstruct biases
                  resident((n, Cp)),                            # segment-mean matrix
                  resident((hh, n)), resident((n, hh)),         # head W^T / W
                  resident((hh, 1)), resident((n, 1))],         # head biases
        out_specs=(pl.BlockSpec((n, tb), lambda i: (0, i)),
                   pl.BlockSpec((1, tb), lambda i: (0, i))),
        compiler_params=pltpu.CompilerParams(
            dimension_semantics=("parallel",)),                 # shard batch tiles across TCs
    )(xg_t, packed['We'], packed['Wd'], packed['hb'], packed['rb'], packed['seg'],
      packed['wht'], packed['wh'], packed['hbh'], packed['rbh'])

    return {'tails_losses': tails_nb[:, :B].T, 'head_loss': head_1b[0, :B]}


def _reference(x, clusters, tail_params, head_params):
    cols = []
    for c, (w, hb_, rb_) in zip(clusters, tail_params):
        feat = x[:, jnp.asarray(c)]
        hidden = jnp.tanh(jnp.dot(feat, w) + hb_)
        recon = jax.nn.sigmoid(jnp.dot(hidden, w.T) + rb_)
        cols.append(jnp.sqrt((recon - feat) ** 2 + EPS).mean(-1))
    tails = jnp.stack(cols, axis=1)
    wh, hbh, rbh = head_params
    hh = jnp.tanh(jnp.dot(tails, wh) + hbh)
    recon = jax.nn.sigmoid(jnp.dot(hh, wh.T) + rbh)
    head = jnp.sqrt((recon - tails) ** 2 + EPS).mean(-1)
    return tails, head


def _init_tiny_ae(key, in_features, compression_rate=0.6):
    hidden_units = max(1, int(in_features * (1.0 - compression_rate)))
    w = jax.random.uniform(key, (in_features, hidden_units), jnp.float32,
                           minval=-1.0 / in_features, maxval=1.0 / in_features)
    return w, jnp.zeros((hidden_units,), jnp.float32), jnp.zeros((in_features,), jnp.float32)


if __name__ == "__main__":
    key = jax.random.PRNGKey(0)
    B, D = 8, 16
    # Deterministic "fitted" FeatureMapper clusters (each >= 4 features).
    clusters = [[0, 4, 8, 12], [1, 5, 9, 13], [2, 6, 10, 14], [3, 7, 11, 15]]
    n_clusters = len(clusters)

    kx, *ktails = jax.random.split(key, 1 + n_clusters + 1)
    x = jax.random.uniform(kx, (B, D), jnp.float32)  # inputs normalized to [0, 1]

    tail_params = [_init_tiny_ae(ktails[i], len(c)) for i, c in enumerate(clusters)]
    head_params = _init_tiny_ae(ktails[-1], n_clusters)

    packed = pack_kitsune_params(clusters, tail_params, head_params)
    out = jax.block_until_ready(kitsune_forward(x, packed))

    ref_tails, ref_head = _reference(x, clusters, tail_params, head_params)
    assert out['tails_losses'].shape == (B, n_clusters)
    assert out['head_loss'].shape == (B,)
    assert jnp.allclose(out['tails_losses'], ref_tails, rtol=1e-3, atol=1e-3)
    assert jnp.allclose(out['head_loss'], ref_head, rtol=1e-3, atol=1e-3)

    print("KERNEL_OK")
</pallas_src>

<mosaic_0001>
module attributes {stable_mosaic.version = 11 : i64} {
  func.func @_kitsune_kernel(%arg0: i32, %arg1: memref<16x128xf32, #tpu.memory_space<vmem>>, %arg2: memref<4x16xf32, #tpu.memory_space<vmem>>, %arg3: memref<16x4xf32, #tpu.memory_space<vmem>>, %arg4: memref<4x1xf32, #tpu.memory_space<vmem>>, %arg5: memref<16x1xf32, #tpu.memory_space<vmem>>, %arg6: memref<4x16xf32, #tpu.memory_space<vmem>>, %arg7: memref<1x4xf32, #tpu.memory_space<vmem>>, %arg8: memref<4x1xf32, #tpu.memory_space<vmem>>, %arg9: memref<1x1xf32, #tpu.memory_space<vmem>>, %arg10: memref<4x1xf32, #tpu.memory_space<vmem>>, %arg11: memref<4x128xf32, #tpu.memory_space<vmem>>, %arg12: memref<1x128xf32, #tpu.memory_space<vmem>>) attributes {dimension_semantics = [#tpu.dimension_semantics<parallel>], iteration_bounds = array<i64: 1>, scalar_prefetch = 0 : i64, scratch_operands = 0 : i64, tpu.core_type = #tpu.core_type<tc>, window_params = [{transform_indices = @transform_0, window_bounds = array<i64: 16, 128>}, {pipeline_mode = #tpu.pipeline_mode<synchronous>, transform_indices = @transform_1, window_bounds = array<i64: 4, 16>}, {pipeline_mode = #tpu.pipeline_mode<synchronous>, transform_indices = @transform_2, window_bounds = array<i64: 16, 4>}, {pipeline_mode = #tpu.pipeline_mode<synchronous>, transform_indices = @transform_3, window_bounds = array<i64: 4, 1>}, {pipeline_mode = #tpu.pipeline_mode<synchronous>, transform_indices = @transform_4, window_bounds = array<i64: 16, 1>}, {pipeline_mode = #tpu.pipeline_mode<synchronous>, transform_indices = @transform_5, window_bounds = array<i64: 4, 16>}, {pipeline_mode = #tpu.pipeline_mode<synchronous>, transform_indices = @transform_6, window_bounds = array<i64: 1, 4>}, {pipeline_mode = #tpu.pipeline_mode<synchronous>, transform_indices = @transform_7, window_bounds = array<i64: 4, 1>}, {pipeline_mode = #tpu.pipeline_mode<synchronous>, transform_indices = @transform_8, window_bounds = array<i64: 1, 1>}, {pipeline_mode = #tpu.pipeline_mode<synchronous>, transform_indices = @transform_9, window_bounds = array<i64: 4, 1>}, {transform_indices = @transform_10, window_bounds = array<i64: 4, 128>}, {transform_indices = @transform_11, window_bounds = array<i64: 1, 128>}]} {
    %c0 = arith.constant 0 : index
    %c0_0 = arith.constant 0 : index
    %0 = vector.load %arg1[%c0, %c0_0] : memref<16x128xf32, #tpu.memory_space<vmem>>, vector<16x128xf32>
    %c0_1 = arith.constant 0 : index
    %c0_2 = arith.constant 0 : index
    %1 = vector.load %arg2[%c0_1, %c0_2] : memref<4x16xf32, #tpu.memory_space<vmem>>, vector<4x16xf32>
    %cst = arith.constant dense<0.000000e+00> : vector<4x128xf32>
    %2 = tpu.matmul %1, %0, %cst {dimension_numbers = #tpu.dot_dimension_numbers<[1], [0], [0], [1], [0, 0, 1, 1], [], []>} : vector<4x16xf32>, vector<16x128xf32>, vector<4x128xf32> -> vector<4x128xf32>
    %c0_3 = arith.constant 0 : index
    %c0_4 = arith.constant 0 : index
    %3 = vector.load %arg4[%c0_3, %c0_4] : memref<4x1xf32, #tpu.memory_space<vmem>>, vector<4x1xf32>
    %4 = vector.broadcast %3 : vector<4x1xf32> to vector<4x128xf32>
    %5 = arith.addf %2, %4 : vector<4x128xf32>
    %6 = math.tanh %5 : vector<4x128xf32>
    %c0_5 = arith.constant 0 : index
    %c0_6 = arith.constant 0 : index
    %7 = vector.load %arg3[%c0_5, %c0_6] : memref<16x4xf32, #tpu.memory_space<vmem>>, vector<16x4xf32>
    %cst_7 = arith.constant dense<0.000000e+00> : vector<16x128xf32>
    %8 = tpu.matmul %7, %6, %cst_7 {dimension_numbers = #tpu.dot_dimension_numbers<[1], [0], [0], [1], [0, 0, 1, 1], [], []>} : vector<16x4xf32>, vector<4x128xf32>, vector<16x128xf32> -> vector<16x128xf32>
    %c0_8 = arith.constant 0 : index
    %c0_9 = arith.constant 0 : index
    %9 = vector.load %arg5[%c0_8, %c0_9] : memref<16x1xf32, #tpu.memory_space<vmem>>, vector<16x1xf32>
    %10 = vector.broadcast %9 : vector<16x1xf32> to vector<16x128xf32>
    %11 = arith.addf %8, %10 : vector<16x128xf32>
    %12 = arith.negf %11 : vector<16x128xf32>
    %13 = math.exp %12 : vector<16x128xf32>
    %cst_10 = arith.constant 1.000000e+00 : f32
    %14 = vector.broadcast %cst_10 : f32 to vector<16x128xf32>
    %15 = arith.addf %14, %13 : vector<16x128xf32>
    %16 = arith.divf %14, %15 : vector<16x128xf32>
    %17 = arith.subf %16, %0 : vector<16x128xf32>
    %18 = arith.mulf %17, %17 : vector<16x128xf32>
    %cst_11 = arith.constant 1.000000e-07 : f32
    %19 = vector.broadcast %cst_11 : f32 to vector<16x128xf32>
    %20 = arith.addf %18, %19 : vector<16x128xf32>
    %21 = math.sqrt %20 : vector<16x128xf32>
    %c0_12 = arith.constant 0 : index
    %c0_13 = arith.constant 0 : index
    %22 = vector.load %arg6[%c0_12, %c0_13] : memref<4x16xf32, #tpu.memory_space<vmem>>, vector<4x16xf32>
    %cst_14 = arith.constant dense<0.000000e+00> : vector<4x128xf32>
    %23 = tpu.matmul %22, %21, %cst_14 {dimension_numbers = #tpu.dot_dimension_numbers<[1], [0], [0], [1], [0, 0, 1, 1], [], []>, precision = #tpu.contract_precision<fp32>} : vector<4x16xf32>, vector<16x128xf32>, vector<4x128xf32> -> vector<4x128xf32>
    %c0_15 = arith.constant 0 : index
    %c0_16 = arith.constant 0 : index
    %24 = vector.load %arg11[%c0_15, %c0_16] : memref<4x128xf32, #tpu.memory_space<vmem>>, vector<4x128xf32>
    tpu.vector_store %arg11[%c0_15, %c0_16], %23 {strides = array<i32>} : memref<4x128xf32, #tpu.memory_space<vmem>>, vector<4x128xf32>,
    %c0_17 = arith.constant 0 : index
    %c0_18 = arith.constant 0 : index
    %25 = vector.load %arg7[%c0_17, %c0_18] : memref<1x4xf32, #tpu.memory_space<vmem>>, vector<1x4xf32>
    %cst_19 = arith.constant dense<0.000000e+00> : vector<1x128xf32>
    %26 = tpu.matmul %25, %23, %cst_19 {dimension_numbers = #tpu.dot_dimension_numbers<[1], [0], [0], [1], [0, 0, 1, 1], [], []>} : vector<1x4xf32>, vector<4x128xf32>, vector<1x128xf32> -> vector<1x128xf32>
    %c0_20 = arith.constant 0 : index
    %c0_21 = arith.constant 0 : index
    %27 = vector.load %arg9[%c0_20, %c0_21] : memref<1x1xf32, #tpu.memory_space<vmem>>, vector<1x1xf32>
    %28 = vector.broadcast %27 : vector<1x1xf32> to vector<1x128xf32>
    %29 = arith.addf %26, %28 : vector<1x128xf32>
    %30 = math.tanh %29 : vector<1x128xf32>
    %c0_22 = arith.constant 0 : index
    %c0_23 = arith.constant 0 : index
    %31 = vector.load %arg8[%c0_22, %c0_23] : memref<4x1xf32, #tpu.memory_space<vmem>>, vector<4x1xf32>
    %cst_24 = arith.constant dense<0.000000e+00> : vector<4x128xf32>
    %32 = tpu.matmul %31, %30, %cst_24 {dimension_numbers = #tpu.dot_dimension_numbers<[1], [0], [0], [1], [0, 0, 1, 1], [], []>} : vector<4x1xf32>, vector<1x128xf32>, vector<4x128xf32> -> vector<4x128xf32>
    %c0_25 = arith.constant 0 : index
    %c0_26 = arith.constant 0 : index
    %33 = vector.load %arg10[%c0_25, %c0_26] : memref<4x1xf32, #tpu.memory_space<vmem>>, vector<4x1xf32>
    %34 = vector.broadcast %33 : vector<4x1xf32> to vector<4x128xf32>
    %35 = arith.addf %32, %34 : vector<4x128xf32>
    %36 = arith.negf %35 : vector<4x128xf32>
    %37 = math.exp %36 : vector<4x128xf32>
    %cst_27 = arith.constant 1.000000e+00 : f32
    %38 = vector.broadcast %cst_27 : f32 to vector<4x128xf32>
    %39 = arith.addf %38, %37 : vector<4x128xf32>
    %40 = arith.divf %38, %39 : vector<4x128xf32>
    %41 = arith.subf %40, %23 : vector<4x128xf32>
    %42 = arith.mulf %41, %41 : vector<4x128xf32>
    %cst_28 = arith.constant 1.000000e-07 : f32
    %43 = vector.broadcast %cst_28 : f32 to vector<4x128xf32>
    %44 = arith.addf %42, %43 : vector<4x128xf32>
    %45 = math.sqrt %44 : vector<4x128xf32>
    %cst_29 = arith.constant dense<0.000000e+00> : vector<128xf32>
    %46 = vector.multi_reduction <add>, %45, %cst_29 [0] : vector<4x128xf32> to vector<128xf32>
    %47 = vector.shape_cast %46 : vector<128xf32> to vector<1x128xf32>
    %cst_30 = arith.constant 2.500000e-01 : f32
    %48 = vector.broadcast %cst_30 : f32 to vector<1x128xf32>
    %49 = arith.mulf %47, %48 : vector<1x128xf32>
    %c0_31 = arith.constant 0 : index
    %c0_32 = arith.constant 0 : index
    %50 = vector.load %arg12[%c0_31, %c0_32] : memref<1x128xf32, #tpu.memory_space<vmem>>, vector<1x128xf32>
    tpu.vector_store %arg12[%c0_31, %c0_32], %49 {strides = array<i32>} : memref<1x128xf32, #tpu.memory_space<vmem>>, vector<1x128xf32>,
    return
  }
  func.func @transform_0(%arg0: i32) -> (i32, i32) {
    %c0_i32 = arith.constant 0 : i32
    %c0_i32_0 = arith.constant 0 : i32
    return %c0_i32, %arg0 : i32, i32
  }
  func.func @transform_1(%arg0: i32) -> (i32, i32) {
    %c0_i32 = arith.constant 0 : i32
    %c0_i32_0 = arith.constant 0 : i32
    %c0_i32_1 = arith.constant 0 : i32
    return %c0_i32, %c0_i32_0 : i32, i32
  }
  func.func @transform_2(%arg0: i32) -> (i32, i32) {
    %c0_i32 = arith.constant 0 : i32
    %c0_i32_0 = arith.constant 0 : i32
    %c0_i32_1 = arith.constant 0 : i32
    return %c0_i32, %c0_i32_0 : i32, i32
  }
  func.func @transform_3(%arg0: i32) -> (i32, i32) {
    %c0_i32 = arith.constant 0 : i32
    %c0_i32_0 = arith.constant 0 : i32
    %c0_i32_1 = arith.constant 0 : i32
    return %c0_i32, %c0_i32_0 : i32, i32
  }
  func.func @transform_4(%arg0: i32) -> (i32, i32) {
    %c0_i32 = arith.constant 0 : i32
    %c0_i32_0 = arith.constant 0 : i32
    %c0_i32_1 = arith.constant 0 : i32
    return %c0_i32, %c0_i32_0 : i32, i32
  }
  func.func @transform_5(%arg0: i32) -> (i32, i32) {
    %c0_i32 = arith.constant 0 : i32
    %c0_i32_0 = arith.constant 0 : i32
    %c0_i32_1 = arith.constant 0 : i32
    return %c0_i32, %c0_i32_0 : i32, i32
  }
  func.func @transform_6(%arg0: i32) -> (i32, i32) {
    %c0_i32 = arith.constant 0 : i32
    %c0_i32_0 = arith.constant 0 : i32
    %c0_i32_1 = arith.constant 0 : i32
    return %c0_i32, %c0_i32_0 : i32, i32
  }
  func.func @transform_7(%arg0: i32) -> (i32, i32) {
    %c0_i32 = arith.constant 0 : i32
    %c0_i32_0 = arith.constant 0 : i32
    %c0_i32_1 = arith.constant 0 : i32
    return %c0_i32, %c0_i32_0 : i32, i32
  }
  func.func @transform_8(%arg0: i32) -> (i32, i32) {
    %c0_i32 = arith.constant 0 : i32
    %c0_i32_0 = arith.constant 0 : i32
    %c0_i32_1 = arith.constant 0 : i32
    return %c0_i32, %c0_i32_0 : i32, i32
  }
  func.func @transform_9(%arg0: i32) -> (i32, i32) {
    %c0_i32 = arith.constant 0 : i32
    %c0_i32_0 = arith.constant 0 : i32
    %c0_i32_1 = arith.constant 0 : i32
    return %c0_i32, %c0_i32_0 : i32, i32
  }
  func.func @transform_10(%arg0: i32) -> (i32, i32) {
    %c0_i32 = arith.constant 0 : i32
    %c0_i32_0 = arith.constant 0 : i32
    return %c0_i32, %arg0 : i32, i32
  }
  func.func @transform_11(%arg0: i32) -> (i32, i32) {
    %c0_i32 = arith.constant 0 : i32
    %c0_i32_0 = arith.constant 0 : i32
    return %c0_i32, %arg0 : i32, i32
  }
}

</mosaic_0001>

<llo_original>
// kernel: tpu_custom_call.1
$region0: #{tpu_custom_call.1}
  #allocation0 [shape = 'u32[]', space=smem, size = 0x4, offset = 0x4, fixed_abs, tag = 'smem constant byte address 0x4 - core index']
  #allocation1 [shape = 'u32[144,128]{1,0:T(1,128)}', space=vmem, size = 0x12000, scoped, tag = 'internal scratch']
  #allocation2 [shape = 'f32[1,1]{1,0:T(1,128)S(1)}', space=vmem, size = 0x200, scoped, tag = 'scoped memory for tpu_custom_call.1']
  %s0 = inlined_call_operand.vmem [shape: f32[16,128], index: 0, kind: input, shape index: {}]
  %s1 = inlined_call_operand.vmem [shape: f32[4,16], index: 1, kind: input, shape index: {}]
  %s2 = inlined_call_operand.vmem [shape: f32[16,4], index: 2, kind: input, shape index: {}]
  %s3 = inlined_call_operand.vmem [shape: f32[4,1], index: 3, kind: input, shape index: {}]
  %s4 = inlined_call_operand.vmem [shape: f32[16,1], index: 4, kind: input, shape index: {}]
  %s5 = inlined_call_operand.vmem [shape: f32[4,16], index: 5, kind: input, shape index: {}]
  %s6 = inlined_call_operand.vmem [shape: f32[1,4], index: 6, kind: input, shape index: {}]
  %s7 = inlined_call_operand.vmem [shape: f32[4,1], index: 7, kind: input, shape index: {}]
  %s8 = inlined_call_operand.<no memory space> [shape: f32[1,1], index: 8, kind: input, shape index: {}]
  %s9 = inlined_call_operand.vmem [shape: f32[4,1], index: 9, kind: input, shape index: {}]
  %s10 = inlined_call_operand.hbm [shape: f32[4,128], index: 10, kind: output, shape index: {0}]
  %s11 = inlined_call_operand.hbm [shape: f32[1,128], index: 11, kind: output, shape index: {1}]
  %12 = xla_tuple %s10, %s11
  %s13 = sld [smem:[#allocation0]]
  $region58: #{tpu_custom_call.1} parent=0
    _
  %s15 = ssub.s32 1, %s13
  %s16 = scalar_select 0, %s15, %s13
  %v17 = vstv %s8
  %18 = vst [vmem:[#allocation2] sm:$0x1] %v17
  $region1: #{tpu_custom_call.1} parent=0
    #allocation3 [shape = 'u8[2048]{0}', space=vmem, size = 0x800, scoped, tag = 'output window, operand 0, single buffered']
    #allocation4 [shape = 's32[1]{0}', space=sflag, size = 0x4, scoped, tag = 'scoped memory for tpu_custom_call.1']
    #allocation5 [shape = 'u8[512]{0}', space=vmem, size = 0x400, scoped, tag = 'output window, operand 1, single buffered']
    #allocation6 [shape = 's32[1]{0}', space=sflag, size = 0x4, scoped, tag = 'scoped memory for tpu_custom_call.1']
    %19 = vsyncpa [#allocation4], 0
    %20 = vsyncpa [#allocation6], 0
    // Predicated region
    $region2: #{tpu_custom_call.1} parent=1 // pred_check
      _
    $region3: #{tpu_custom_call.1} parent=1 // pred_check_branch
      %22 = sbr.rel (0) target = $region5
    $region4: #{tpu_custom_call.1} parent=1 // pred_region
      _
    $region5: #{tpu_custom_call.1} parent=1 // pred_fallthru
      _
    // Predicated region
    $region6: #{tpu_custom_call.1} parent=1 // pred_check
      _
    $region7: #{tpu_custom_call.1} parent=1 // pred_check_branch
      %24 = sbr.rel (0) target = $region9
    $region8: #{tpu_custom_call.1} parent=1 // pred_region
      _
    $region9: #{tpu_custom_call.1} parent=1 // pred_fallthru
      _
    // Predicated region
    $region10: #{tpu_custom_call.1} parent=1 // pred_check
      _
    $region11: #{tpu_custom_call.1} parent=1 // pred_check_branch
      %26 = sbr.rel (0) target = $region13
    $region12: #{tpu_custom_call.1} parent=1 // pred_region
      _
    $region13: #{tpu_custom_call.1} parent=1 // pred_fallthru
      _
    // Predicated region
    $region14: #{tpu_custom_call.1} parent=1 // pred_check
      _
    $region15: #{tpu_custom_call.1} parent=1 // pred_check_branch
      %28 = sbr.rel (0) target = $region17
    $region16: #{tpu_custom_call.1} parent=1 // pred_region
      _
    $region17: #{tpu_custom_call.1} parent=1 // pred_fallthru
      _
    // Predicated region
    $region18: #{tpu_custom_call.1} parent=1 // pred_check
      _
    $region19: #{tpu_custom_call.1} parent=1 // pred_check_branch
      %30 = sbr.rel (0) target = $region21
    $region20: #{tpu_custom_call.1} parent=1 // pred_region
      _
    $region21: #{tpu_custom_call.1} parent=1 // pred_fallthru
      _
    // Predicated region
    $region22: #{tpu_custom_call.1} parent=1 // pred_check
      _
    $region23: #{tpu_custom_call.1} parent=1 // pred_check_branch
      %32 = sbr.rel (0) target = $region25
    $region24: #{tpu_custom_call.1} parent=1 // pred_region
      _
    $region25: #{tpu_custom_call.1} parent=1 // pred_fallthru
      _
    // Predicated region
    $region26: #{tpu_custom_call.1} parent=1 // pred_check
      _
    $region27: #{tpu_custom_call.1} parent=1 // pred_check_branch
      %34 = sbr.rel (0) target = $region29
    $region28: #{tpu_custom_call.1} parent=1 // pred_region
      _
    $region29: #{tpu_custom_call.1} parent=1 // pred_fallthru
      _
    // Predicated region
    $region30: #{tpu_custom_call.1} parent=1 // pred_check
      _
    $region31: #{tpu_custom_call.1} parent=1 // pred_check_branch
      %36 = sbr.rel (0) target = $region33
    $region32: #{tpu_custom_call.1} parent=1 // pred_region
      _
    $region33: #{tpu_custom_call.1} parent=1 // pred_fallthru
      _
    // Predicated region
    $region34: #{tpu_custom_call.1} parent=1 // pred_check
      _
    $region35: #{tpu_custom_call.1} parent=1 // pred_check_branch
      %38 = sbr.rel (0) target = $region37
    $region36: #{tpu_custom_call.1} parent=1 // pred_region
      _
    $region37: #{tpu_custom_call.1} parent=1 // pred_fallthru
      _
    // Predicated region
    $region38: #{tpu_custom_call.1} parent=1 // pred_check
      _
    $region39: #{tpu_custom_call.1} parent=1 // pred_check_branch
      %40 = sbr.rel (0) target = $region41
    $region40: #{tpu_custom_call.1} parent=1 // pred_region
      _
    $region41: #{tpu_custom_call.1} parent=1 // pred_fallthru
      _
    %v41 = vld [vmem:[%s0] sm:$0xff]
    %v42 = vld [vmem:[%s0 + $0x8] sm:$0xff]
    %v43 = vld [vmem:[%s1] sm:$0xf]
    %v44 = vld [vmem:[%s3] sm:$0xf]
    %46 = vset.pattern.permute.xlu0 0
    %47 = vperm.xlu0 %46, %v44
    %v48 = vpop.permute.xlu0 %47
    %vm50 = vcmask 130048
    %v52 = vsel %vm50, %v43, 0
    %54 = vmatprep.subr.mxu0 0.0
    %55 = vmatpush1.msra.mxu0 %v41
    %56 = vmatprep.subr.mxu0 0.0
    %57 = vmatpush1.msra.mxu0 %v42
    %58 = vmatprep.subr.mxu0 0.0
    %59 = vmatpush1.msra.mxu0 0.0
    %60 = vmatprep.subr.mxu0 0.0
    %61 = vmatpush1.msra.mxu0 0.0
    %62 = vmatprep.subr.mxu0 0.0
    %63 = vmatpush1.msra.mxu0 0.0
    %64 = vmatprep.subr.mxu0 0.0
    %65 = vmatpush1.msra.mxu0 0.0
    %66 = vmatprep.subr.mxu0 0.0
    %67 = vmatpush1.msra.mxu0 0.0
    %68 = vmatprep.subr.mxu0 0.0
    %69 = vmatpush1.msra.mxu0 0.0
    %70 = vmatprep.subr.mxu0 0.0
    %71 = vmatpush1.msra.mxu0 0.0
    %72 = vmatprep.subr.mxu0 0.0
    %73 = vmatpush1.msra.mxu0 0.0
    %74 = vmatprep.subr.mxu0 0.0
    %75 = vmatpush1.msra.mxu0 0.0
    %76 = vmatprep.subr.mxu0 0.0
    %77 = vmatpush1.msra.mxu0 0.0
    %78 = vmatprep.subr.mxu0 0.0
    %79 = vmatpush1.msra.mxu0 0.0
    %80 = vmatprep.subr.mxu0 0.0
    %81 = vmatpush1.msra.mxu0 0.0
    %82 = vmatprep.subr.mxu0 0.0
    %83 = vmatpush1.msra.mxu0 0.0
    %84 = vmatprep.subr.mxu0 0.0
    %85 = vmatpush1.msra.mxu0 0.0
    %86 = vmatprep.subr.mxu0 0.0
    %87 = vmatpush1.msra.mxu0 0.0
    %88 = vmatprep.subr.mxu0 0.0
    %89 = vmatpush1.msra.mxu0 0.0
    %90 = vmatprep.subr.mxu0 0.0
    %91 = vmatpush1.msra.mxu0 0.0
    %92 = vmatprep.subr.mxu0 0.0
    %93 = vmatpush1.msra.mxu0 0.0
    %94 = vmatprep.subr.mxu0 0.0
    %95 = vmatpush1.msra.mxu0 0.0
    %96 = vmatprep.subr.mxu0 0.0
    %97 = vmatpush1.msra.mxu0 0.0
    %98 = vmatprep.subr.mxu0 0.0
    %99 = vmatpush1.msra.mxu0 0.0
    %100 = vmatprep.subr.mxu0 0.0
    %101 = vmatpush1.msra.mxu0 0.0
    %102 = vmatprep.subr.mxu0 0.0
    %103 = vmatpush1.msra.mxu0 0.0
    %104 = vmatprep.subr.mxu0 0.0
    %105 = vmatpush1.msra.mxu0 0.0
    %106 = vmatprep.subr.mxu0 0.0
    %107 = vmatpush1.msra.mxu0 0.0
    %108 = vmatprep.subr.mxu0 0.0
    %109 = vmatpush1.msra.mxu0 0.0
    %110 = vmatprep.subr.mxu0 0.0
    %111 = vmatpush1.msra.mxu0 0.0
    %112 = vmatprep.subr.mxu0 0.0
    %113 = vmatpush1.msra.mxu0 0.0
    %114 = vmatprep.subr.mxu0 0.0
    %115 = vmatpush1.msra.mxu0 0.0
    %116 = vmatprep.subr.mxu0 0.0
    %117 = vmatpush1.msra.mxu0 0.0
    %118 = vmatprep.mubr.f32.mxu0 0.0
    %119 = vmatmul.mubr.f32.gmra.mrb[0].mxu0 %v52
    %v120 = vpop.f32.mrb[0].mxu0
    %v121 = vadd.f32 %v48, %v120
    %v122 = vpop.f32.mrb[0].mxu0
    %123 = vdwg.mxu0
    %v124 = vtanh.pop %v121
    %v125 = vld [vmem:[%s2] sm:$0xff]
    %v126 = vld [vmem:[%s2 + $0x8] sm:$0xff]
    %v127 = vld [vmem:[%s4] sm:$0xff]
    %v128 = vld [vmem:[%s4 + $0x8] sm:$0xff]
    %130 = vset.pattern.permute.xlu0 0
    %131 = vperm.xlu0 %130, %v127
    %v132 = vpop.permute.xlu0 %131
    %135 = vset.pattern.permute.xlu0 0
    %136 = vperm.xlu0 %135, %v128
    %v137 = vpop.permute.xlu0 %136
    %vm139 = vcmask 31744
    %v141 = vsel %vm139, %v125, 0
    %v144 = vsel %vm139, %v126, 0
    %vm146 = vcmask 1043456
    %v148 = vsel %vm146, %v124, 0
    %150 = vmatprep.subr.mxu0 0.0
    %151 = vmatpush1.msra.mxu0 %v148
    %152 = vmatprep.subr.mxu0 0.0
    %153 = vmatpush1.msra.mxu0 0.0
    %154 = vmatprep.subr.mxu0 0.0
    %155 = vmatpush1.msra.mxu0 0.0
    %156 = vmatprep.subr.mxu0 0.0
    %157 = vmatpush1.msra.mxu0 0.0
    %158 = vmatprep.subr.mxu0 0.0
    %159 = vmatpush1.msra.mxu0 0.0
    %160 = vmatprep.subr.mxu0 0.0
    %161 = vmatpush1.msra.mxu0 0.0
    %162 = vmatprep.subr.mxu0 0.0
    %163 = vmatpush1.msra.mxu0 0.0
    %164 = vmatprep.subr.mxu0 0.0
    %165 = vmatpush1.msra.mxu0 0.0
    %166 = vmatprep.subr.mxu0 0.0
    %167 = vmatpush1.msra.mxu0 0.0
    %168 = vmatprep.subr.mxu0 0.0
    %169 = vmatpush1.msra.mxu0 0.0
    %170 = vmatprep.subr.mxu0 0.0
    %171 = vmatpush1.msra.mxu0 0.0
    %172 = vmatprep.subr.mxu0 0.0
    %173 = vmatpush1.msra.mxu0 0.0
    %174 = vmatprep.subr.mxu0 0.0
    %175 = vmatpush1.msra.mxu0 0.0
    %176 = vmatprep.subr.mxu0 0.0
    %177 = vmatpush1.msra.mxu0 0.0
    %178 = vmatprep.subr.mxu0 0.0
    %179 = vmatpush1.msra.mxu0 0.0
    %180 = vmatprep.subr.mxu0 0.0
    %181 = vmatpush1.msra.mxu0 0.0
    %182 = vmatprep.subr.mxu0 0.0
    %183 = vmatpush1.msra.mxu0 0.0
    %184 = vmatprep.subr.mxu0 0.0
    %185 = vmatpush1.msra.mxu0 0.0
    %186 = vmatprep.subr.mxu0 0.0
    %187 = vmatpush1.msra.mxu0 0.0
    %188 = vmatprep.subr.mxu0 0.0
    %189 = vmatpush1.msra.mxu0 0.0
    %190 = vmatprep.subr.mxu0 0.0
    %191 = vmatpush1.msra.mxu0 0.0
    %192 = vmatprep.subr.mxu0 0.0
    %193 = vmatpush1.msra.mxu0 0.0
    %194 = vmatprep.subr.mxu0 0.0
    %195 = vmatpush1.msra.mxu0 0.0
    %196 = vmatprep.subr.mxu0 0.0
    %197 = vmatpush1.msra.mxu0 0.0
    %198 = vmatprep.subr.mxu0 0.0
    %199 = vmatpush1.msra.mxu0 0.0
    %200 = vmatprep.subr.mxu0 0.0
    %201 = vmatpush1.msra.mxu0 0.0
    %202 = vmatprep.subr.mxu0 0.0
    %203 = vmatpush1.msra.mxu0 0.0
    %204 = vmatprep.subr.mxu0 0.0
    %205 = vmatpush1.msra.mxu0 0.0
    %206 = vmatprep.subr.mxu0 0.0
    %207 = vmatpush1.msra.mxu0 0.0
    %208 = vmatprep.subr.mxu0 0.0
    %209 = vmatpush1.msra.mxu0 0.0
    %210 = vmatprep.subr.mxu0 0.0
    %211 = vmatpush1.msra.mxu0 0.0
    %212 = vmatprep.subr.mxu0 0.0
    %213 = vmatpush1.msra.mxu0 0.0
    %214 = vmatprep.mubr.f32.mxu0 0.0
    %215 = vmatmul.mubr.f32.gmra.mrb[0].mxu0 %v141
    %v216 = vpop.f32.mrb[0].mxu0
    %v217 = vadd.f32 %v132, %v216
    %v218 = vpop.f32.mrb[0].mxu0
    %219 = vmatprep.mubr.f32.mxu0 0.0
    %220 = vmatmul.mubr.f32.gmra.mrb[0].mxu0 %v144
    %v221 = vpop.f32.mrb[0].mxu0
    %v222 = vadd.f32 %v137, %v221
    %v223 = vpop.f32.mrb[0].mxu0
    %224 = vdwg.mxu0
    %v225 = vxor.u32 %v217, 2147483648
    %v226 = vxor.u32 %v222, 2147483648
    %v227 = vmul.f32 %v225, 1.442695
    %v228 = vpow.pop %v227
    %v229 = vmul.f32 %v226, 1.442695
    %v230 = vpow.pop %v229
    %v231 = vadd.f32 %v228, 1.0
    %v232 = vadd.f32 %v230, 1.0
    %v233 = vrcp.pop %v231
    %v234 = vmul.f32 1.0, %v233
    %v235 = vrcp.pop %v232
    %v236 = vmul.f32 1.0, %v235
    %v237 = vsub.f32 %v234, %v41
    %v238 = vsub.f32 %v236, %v42
    %v239 = vmul.f32 %v237, %v237
    %v240 = vmul.f32 %v238, %v238
    %v241 = vadd.f32 %v239, 1e-07
    %v242 = vadd.f32 %v240, 1e-07
    %v243 = vrsqrt.pop %v241
    %v244 = vmul.f32 %v241, %v243
    %vm245 = vcmp.eq.f32.partialorder %v241, inf
    %v246 = vsel %vm245, %v241, %v244
    %vm247 = vcmp.eq.f32.partialorder %v241, 0.0
    %v248 = vand.u32 %v241, 2147483648
    %v249 = vsel %vm247, %v248, %v246
    %v250 = vrsqrt.pop %v242
    %v251 = vmul.f32 %v242, %v250
    %vm252 = vcmp.eq.f32.partialorder %v242, inf
    %v253 = vsel %vm252, %v242, %v251
    %vm254 = vcmp.eq.f32.partialorder %v242, 0.0
    %v255 = vand.u32 %v242, 2147483648
    %v256 = vsel %vm254, %v255, %v253
    %v257 = vld [vmem:[%s5] sm:$0xf]
    %v259 = vsel %vm50, %v257, 0
    %261 = vmatprep.subr.mxu0 0.0
    %v262 = vand.u32 %v249, 4294901760
    %263 = vmatpush1.msra.mxu0 %v262
    %264 = vmatprep.subr.mxu0 0.0
    %v265 = vand.u32 %v256, 4294901760
    %266 = vmatpush1.msra.mxu0 %v265
    %267 = vmatprep.subr.mxu0 0.0
    %268 = vmatpush1.msra.mxu0 0.0
    %269 = vmatprep.subr.mxu0 0.0
    %270 = vmatpush1.msra.mxu0 0.0
    %271 = vmatprep.subr.mxu0 0.0
    %272 = vmatpush1.msra.mxu0 0.0
    %273 = vmatprep.subr.mxu0 0.0
    %274 = vmatpush1.msra.mxu0 0.0
    %275 = vmatprep.subr.mxu0 0.0
    %276 = vmatpush1.msra.mxu0 0.0
    %277 = vmatprep.subr.mxu0 0.0
    %278 = vmatpush1.msra.mxu0 0.0
    %279 = vmatprep.subr.mxu0 0.0
    %280 = vmatpush1.msra.mxu0 0.0
    %281 = vmatprep.subr.mxu0 0.0
    %282 = vmatpush1.msra.mxu0 0.0
    %283 = vmatprep.subr.mxu0 0.0
    %284 = vmatpush1.msra.mxu0 0.0
    %285 = vmatprep.subr.mxu0 0.0
    %286 = vmatpush1.msra.mxu0 0.0
    %287 = vmatprep.subr.mxu0 0.0
    %288 = vmatpush1.msra.mxu0 0.0
    %289 = vmatprep.subr.mxu0 0.0
    %290 = vmatpush1.msra.mxu0 0.0
    %291 = vmatprep.subr.mxu0 0.0
    %292 = vmatpush1.msra.mxu0 0.0
    %293 = vmatprep.subr.mxu0 0.0
    %294 = vmatpush1.msra.mxu0 0.0
    %295 = vmatprep.subr.mxu0 0.0
    %296 = vmatpush1.msra.mxu0 0.0
    %297 = vmatprep.subr.mxu0 0.0
    %298 = vmatpush1.msra.mxu0 0.0
    %299 = vmatprep.subr.mxu0 0.0
    %300 = vmatpush1.msra.mxu0 0.0
    %301 = vmatprep.subr.mxu0 0.0
    %302 = vmatpush1.msra.mxu0 0.0
    %303 = vmatprep.subr.mxu0 0.0
    %304 = vmatpush1.msra.mxu0 0.0
    %305 = vmatprep.subr.mxu0 0.0
    %306 = vmatpush1.msra.mxu0 0.0
    %307 = vmatprep.subr.mxu0 0.0
    %308 = vmatpush1.msra.mxu0 0.0
    %309 = vmatprep.subr.mxu0 0.0
    %310 = vmatpush1.msra.mxu0 0.0
    %311 = vmatprep.subr.mxu0 0.0
    %312 = vmatpush1.msra.mxu0 0.0
    %313 = vmatprep.subr.mxu0 0.0
    %314 = vmatpush1.msra.mxu0 0.0
    %315 = vmatprep.subr.mxu0 0.0
    %316 = vmatpush1.msra.mxu0 0.0
    %317 = vmatprep.subr.mxu0 0.0
    %318 = vmatpush1.msra.mxu0 0.0
    %319 = vmatprep.subr.mxu0 0.0
    %320 = vmatpush1.msra.mxu0 0.0
    %321 = vmatprep.subr.mxu0 0.0
    %322 = vmatpush1.msra.mxu0 0.0
    %323 = vmatprep.subr.mxu0 0.0
    %324 = vmatpush1.msra.mxu0 0.0
    %325 = vmatprep.subr.mxu0 0.0
    %326 = vmatpush1.msra.mxu0 0.0
    %327 = vmatprep.mubr.f32.mxu0 0.0
    %v328 = vand.u32 %v259, 4294901760
    %v329 = vsub.f32 %v259, %v328
    %v330 = vand.u32 %v329, 4294901760
    %v331 = vsub.f32 %v329, %v330
    %v332 = vand.u32 %v331, 4294901760
    %333 = vmatmul.mubr.f32.gmra.mrb[0].mxu0 %v332
    %v334 = vpop.f32.mrb[0].mxu0
    %v335 = vadd.f32 0.0, %v334
    %v336 = vpop.f32.mrb[0].mxu0
    %337 = vdwg.mxu0
    %338 = vmatprep.subr.mxu0 0.0
    %v339 = vand.u32 %v249, 4294901760
    %v340 = vsub.f32 %v249, %v339
    %v341 = vand.u32 %v340, 4294901760
    %v342 = vsub.f32 %v340, %v341
    %v343 = vand.u32 %v342, 4294901760
    %344 = vmatpush1.msra.mxu0 %v343
    %345 = vmatprep.subr.mxu0 0.0
    %v346 = vand.u32 %v256, 4294901760
    %v347 = vsub.f32 %v256, %v346
    %v348 = vand.u32 %v347, 4294901760
    %v349 = vsub.f32 %v347, %v348
    %v350 = vand.u32 %v349, 4294901760
    %351 = vmatpush1.msra.mxu0 %v350
    %352 = vmatprep.subr.mxu0 0.0
    %353 = vmatpush1.msra.mxu0 0.0
    %354 = vmatprep.subr.mxu0 0.0
    %355 = vmatpush1.msra.mxu0 0.0
    %356 = vmatprep.subr.mxu0 0.0
    %357 = vmatpush1.msra.mxu0 0.0
    %358 = vmatprep.subr.mxu0 0.0
    %359 = vmatpush1.msra.mxu0 0.0
    %360 = vmatprep.subr.mxu0 0.0
    %361 = vmatpush1.msra.mxu0 0.0
    %362 = vmatprep.subr.mxu0 0.0
    %363 = vmatpush1.msra.mxu0 0.0
    %364 = vmatprep.subr.mxu0 0.0
    %365 = vmatpush1.msra.mxu0 0.0
    %366 = vmatprep.subr.mxu0 0.0
    %367 = vmatpush1.msra.mxu0 0.0
    %368 = vmatprep.subr.mxu0 0.0
    %369 = vmatpush1.msra.mxu0 0.0
    %370 = vmatprep.subr.mxu0 0.0
    %371 = vmatpush1.msra.mxu0 0.0
    %372 = vmatprep.subr.mxu0 0.0
    %373 = vmatpush1.msra.mxu0 0.0
    %374 = vmatprep.subr.mxu0 0.0
    %375 = vmatpush1.msra.mxu0 0.0
    %376 = vmatprep.subr.mxu0 0.0
    %377 = vmatpush1.msra.mxu0 0.0
    %378 = vmatprep.subr.mxu0 0.0
    %379 = vmatpush1.msra.mxu0 0.0
    %380 = vmatprep.subr.mxu0 0.0
    %381 = vmatpush1.msra.mxu0 0.0
    %382 = vmatprep.subr.mxu0 0.0
    %383 = vmatpush1.msra.mxu0 0.0
    %384 = vmatprep.subr.mxu0 0.0
    %385 = vmatpush1.msra.mxu0 0.0
    %386 = vmatprep.subr.mxu0 0.0
    %387 = vmatpush1.msra.mxu0 0.0
    %388 = vmatprep.subr.mxu0 0.0
    %389 = vmatpush1.msra.mxu0 0.0
    %390 = vmatprep.subr.mxu0 0.0
    %391 = vmatpush1.msra.mxu0 0.0
    %392 = vmatprep.subr.mxu0 0.0
    %393 = vmatpush1.msra.mxu0 0.0
    %394 = vmatprep.subr.mxu0 0.0
    %395 = vmatpush1.msra.mxu0 0.0
    %396 = vmatprep.subr.mxu0 0.0
    %397 = vmatpush1.msra.mxu0 0.0
    %398 = vmatprep.subr.mxu0 0.0
    %399 = vmatpush1.msra.mxu0 0.0
    %400 = vmatprep.subr.mxu0 0.0
    %401 = vmatpush1.msra.mxu0 0.0
    %402 = vmatprep.subr.mxu0 0.0
    %403 = vmatpush1.msra.mxu0 0.0
    %404 = vmatprep.subr.mxu0 0.0
    %405 = vmatpush1.msra.mxu0 0.0
    %406 = vmatprep.subr.mxu0 0.0
    %407 = vmatpush1.msra.mxu0 0.0
    %408 = vmatprep.subr.mxu0 0.0
    %409 = vmatpush1.msra.mxu0 0.0
    %410 = vmatprep.subr.mxu0 0.0
    %411 = vmatpush1.msra.mxu0 0.0
    %412 = vmatprep.mubr.f32.mxu0 0.0
    %v413 = vand.u32 %v259, 4294901760
    %414 = vmatmul.mubr.f32.gmra.mrb[0].mxu0 %v413
    %v415 = vpop.f32.mrb[0].mxu0
    %v416 = vadd.f32 %v335, %v415
    %v417 = vpop.f32.mrb[0].mxu0
    %418 = vdwg.mxu0
    %419 = vmatprep.subr.mxu0 0.0
    %v420 = vand.u32 %v249, 4294901760
    %v421 = vsub.f32 %v249, %v420
    %422 = vmatpush1.msra.mxu0 %v421
    %423 = vmatprep.subr.mxu0 0.0
    %v424 = vand.u32 %v256, 4294901760
    %v425 = vsub.f32 %v256, %v424
    %426 = vmatpush1.msra.mxu0 %v425
    %427 = vmatprep.subr.mxu0 0.0
    %428 = vmatpush1.msra.mxu0 0.0
    %429 = vmatprep.subr.mxu0 0.0
    %430 = vmatpush1.msra.mxu0 0.0
    %431 = vmatprep.subr.mxu0 0.0
    %432 = vmatpush1.msra.mxu0 0.0
    %433 = vmatprep.subr.mxu0 0.0
    %434 = vmatpush1.msra.mxu0 0.0
    %435 = vmatprep.subr.mxu0 0.0
    %436 = vmatpush1.msra.mxu0 0.0
    %437 = vmatprep.subr.mxu0 0.0
    %438 = vmatpush1.msra.mxu0 0.0
    %439 = vmatprep.subr.mxu0 0.0
    %440 = vmatpush1.msra.mxu0 0.0
    %441 = vmatprep.subr.mxu0 0.0
    %442 = vmatpush1.msra.mxu0 0.0
    %443 = vmatprep.subr.mxu0 0.0
    %444 = vmatpush1.msra.mxu0 0.0
    %445 = vmatprep.subr.mxu0 0.0
    %446 = vmatpush1.msra.mxu0 0.0
    %447 = vmatprep.subr.mxu0 0.0
    %448 = vmatpush1.msra.mxu0 0.0
    %449 = vmatprep.subr.mxu0 0.0
    %450 = vmatpush1.msra.mxu0 0.0
    %451 = vmatprep.subr.mxu0 0.0
    %452 = vmatpush1.msra.mxu0 0.0
    %453 = vmatprep.subr.mxu0 0.0
    %454 = vmatpush1.msra.mxu0 0.0
    %455 = vmatprep.subr.mxu0 0.0
    %456 = vmatpush1.msra.mxu0 0.0
    %457 = vmatprep.subr.mxu0 0.0
    %458 = vmatpush1.msra.mxu0 0.0
    %459 = vmatprep.subr.mxu0 0.0
    %460 = vmatpush1.msra.mxu0 0.0
    %461 = vmatprep.subr.mxu0 0.0
    %462 = vmatpush1.msra.mxu0 0.0
    %463 = vmatprep.subr.mxu0 0.0
    %464 = vmatpush1.msra.mxu0 0.0
    %465 = vmatprep.subr.mxu0 0.0
    %466 = vmatpush1.msra.mxu0 0.0
    %467 = vmatprep.subr.mxu0 0.0
    %468 = vmatpush1.msra.mxu0 0.0
    %469 = vmatprep.subr.mxu0 0.0
    %470 = vmatpush1.msra.mxu0 0.0
    %471 = vmatprep.subr.mxu0 0.0
    %472 = vmatpush1.msra.mxu0 0.0
    %473 = vmatprep.subr.mxu0 0.0
    %474 = vmatpush1.msra.mxu0 0.0
    %475 = vmatprep.subr.mxu0 0.0
    %476 = vmatpush1.msra.mxu0 0.0
    %477 = vmatprep.subr.mxu0 0.0
    %478 = vmatpush1.msra.mxu0 0.0
    %479 = vmatprep.subr.mxu0 0.0
    %480 = vmatpush1.msra.mxu0 0.0
    %481 = vmatprep.subr.mxu0 0.0
    %482 = vmatpush1.msra.mxu0 0.0
    %483 = vmatprep.subr.mxu0 0.0
    %484 = vmatpush1.msra.mxu0 0.0
    %485 = vmatprep.subr.mxu0 0.0
    %486 = vmatpush1.msra.mxu0 0.0
    %487 = vmatprep.mubr.f32.mxu0 0.0
    %v488 = vand.u32 %v259, 4294901760
    %v489 = vsub.f32 %v259, %v488
    %490 = vmatmul.mubr.f32.gmra.mrb[0].mxu0 %v489
    %v491 = vpop.f32.mrb[0].mxu0
    %v492 = vadd.f32 %v416, %v491
    %v493 = vpop.f32.mrb[0].mxu0
    %494 = vdwg.mxu0
    %495 = vmatprep.subr.mxu0 0.0
    %v496 = vand.u32 %v249, 4294901760
    %497 = vmatpush1.msra.mxu0 %v496
    %498 = vmatprep.subr.mxu0 0.0
    %v499 = vand.u32 %v256, 4294901760
    %500 = vmatpush1.msra.mxu0 %v499
    %501 = vmatprep.subr.mxu0 0.0
    %502 = vmatpush1.msra.mxu0 0.0
    %503 = vmatprep.subr.mxu0 0.0
    %504 = vmatpush1.msra.mxu0 0.0
    %505 = vmatprep.subr.mxu0 0.0
    %506 = vmatpush1.msra.mxu0 0.0
    %507 = vmatprep.subr.mxu0 0.0
    %508 = vmatpush1.msra.mxu0 0.0
    %509 = vmatprep.subr.mxu0 0.0
    %510 = vmatpush1.msra.mxu0 0.0
    %511 = vmatprep.subr.mxu0 0.0
    %512 = vmatpush1.msra.mxu0 0.0
    %513 = vmatprep.subr.mxu0 0.0
    %514 = vmatpush1.msra.mxu0 0.0
    %515 = vmatprep.subr.mxu0 0.0
    %516 = vmatpush1.msra.mxu0 0.0
    %517 = vmatprep.subr.mxu0 0.0
    %518 = vmatpush1.msra.mxu0 0.0
    %519 = vmatprep.subr.mxu0 0.0
    %520 = vmatpush1.msra.mxu0 0.0
    %521 = vmatprep.subr.mxu0 0.0
    %522 = vmatpush1.msra.mxu0 0.0
    %523 = vmatprep.subr.mxu0 0.0
    %524 = vmatpush1.msra.mxu0 0.0
    %525 = vmatprep.subr.mxu0 0.0
    %526 = vmatpush1.msra.mxu0 0.0
    %527 = vmatprep.subr.mxu0 0.0
    %528 = vmatpush1.msra.mxu0 0.0
    %529 = vmatprep.subr.mxu0 0.0
    %530 = vmatpush1.msra.mxu0 0.0
    %531 = vmatprep.subr.mxu0 0.0
    %532 = vmatpush1.msra.mxu0 0.0
    %533 = vmatprep.subr.mxu0 0.0
    %534 = vmatpush1.msra.mxu0 0.0
    %535 = vmatprep.subr.mxu0 0.0
    %536 = vmatpush1.msra.mxu0 0.0
    %537 = vmatprep.subr.mxu0 0.0
    %538 = vmatpush1.msra.mxu0 0.0
    %539 = vmatprep.subr.mxu0 0.0
    %540 = vmatpush1.msra.mxu0 0.0
    %541 = vmatprep.subr.mxu0 0.0
    %542 = vmatpush1.msra.mxu0 0.0
    %543 = vmatprep.subr.mxu0 0.0
    %544 = vmatpush1.msra.mxu0 0.0
    %545 = vmatprep.subr.mxu0 0.0
    %546 = vmatpush1.msra.mxu0 0.0
    %547 = vmatprep.subr.mxu0 0.0
    %548 = vmatpush1.msra.mxu0 0.0
    %549 = vmatprep.subr.mxu0 0.0
    %550 = vmatpush1.msra.mxu0 0.0
    %551 = vmatprep.subr.mxu0 0.0
    %552 = vmatpush1.msra.mxu0 0.0
    %553 = vmatprep.subr.mxu0 0.0
    %554 = vmatpush1.msra.mxu0 0.0
    %555 = vmatprep.subr.mxu0 0.0
    %556 = vmatpush1.msra.mxu0 0.0
    %557 = vmatprep.subr.mxu0 0.0
    %558 = vmatpush1.msra.mxu0 0.0
    %559 = vmatprep.subr.mxu0 0.0
    %560 = vmatpush1.msra.mxu0 0.0
    %561 = vmatprep.mubr.f32.mxu0 0.0
    %v562 = vand.u32 %v259, 4294901760
    %v563 = vsub.f32 %v259, %v562
    %v564 = vand.u32 %v563, 4294901760
    %565 = vmatmul.mubr.f32.gmra.mrb[0].mxu0 %v564
    %v566 = vpop.f32.mrb[0].mxu0
    %v567 = vadd.f32 %v492, %v566
    %v568 = vpop.f32.mrb[0].mxu0
    %569 = vdwg.mxu0
    %570 = vmatprep.subr.mxu0 0.0
    %v571 = vand.u32 %v249, 4294901760
    %v572 = vsub.f32 %v249, %v571
    %v573 = vand.u32 %v572, 4294901760
    %574 = vmatpush1.msra.mxu0 %v573
    %575 = vmatprep.subr.mxu0 0.0
    %v576 = vand.u32 %v256, 4294901760
    %v577 = vsub.f32 %v256, %v576
    %v578 = vand.u32 %v577, 4294901760
    %579 = vmatpush1.msra.mxu0 %v578
    %580 = vmatprep.subr.mxu0 0.0
    %581 = vmatpush1.msra.mxu0 0.0
    %582 = vmatprep.subr.mxu0 0.0
    %583 = vmatpush1.msra.mxu0 0.0
    %584 = vmatprep.subr.mxu0 0.0
    %585 = vmatpush1.msra.mxu0 0.0
    %586 = vmatprep.subr.mxu0 0.0
    %587 = vmatpush1.msra.mxu0 0.0
    %588 = vmatprep.subr.mxu0 0.0
    %589 = vmatpush1.msra.mxu0 0.0
    %590 = vmatprep.subr.mxu0 0.0
    %591 = vmatpush1.msra.mxu0 0.0
    %592 = vmatprep.subr.mxu0 0.0
    %593 = vmatpush1.msra.mxu0 0.0
    %594 = vmatprep.subr.mxu0 0.0
    %595 = vmatpush1.msra.mxu0 0.0
    %596 = vmatprep.subr.mxu0 0.0
    %597 = vmatpush1.msra.mxu0 0.0
    %598 = vmatprep.subr.mxu0 0.0
    %599 = vmatpush1.msra.mxu0 0.0
    %600 = vmatprep.subr.mxu0 0.0
    %601 = vmatpush1.msra.mxu0 0.0
    %602 = vmatprep.subr.mxu0 0.0
    %603 = vmatpush1.msra.mxu0 0.0
    %604 = vmatprep.subr.mxu0 0.0
    %605 = vmatpush1.msra.mxu0 0.0
    %606 = vmatprep.subr.mxu0 0.0
    %607 = vmatpush1.msra.mxu0 0.0
    %608 = vmatprep.subr.mxu0 0.0
    %609 = vmatpush1.msra.mxu0 0.0
    %610 = vmatprep.subr.mxu0 0.0
    %611 = vmatpush1.msra.mxu0 0.0
    %612 = vmatprep.subr.mxu0 0.0
    %613 = vmatpush1.msra.mxu0 0.0
    %614 = vmatprep.subr.mxu0 0.0
    %615 = vmatpush1.msra.mxu0 0.0
    %616 = vmatprep.subr.mxu0 0.0
    %617 = vmatpush1.msra.mxu0 0.0
    %618 = vmatprep.subr.mxu0 0.0
    %619 = vmatpush1.msra.mxu0 0.0
    %620 = vmatprep.subr.mxu0 0.0
    %621 = vmatpush1.msra.mxu0 0.0
    %622 = vmatprep.subr.mxu0 0.0
    %623 = vmatpush1.msra.mxu0 0.0
    %624 = vmatprep.subr.mxu0 0.0
    %625 = vmatpush1.msra.mxu0 0.0
    %626 = vmatprep.subr.mxu0 0.0
    %627 = vmatpush1.msra.mxu0 0.0
    %628 = vmatprep.subr.mxu0 0.0
    %629 = vmatpush1.msra.mxu0 0.0
    %630 = vmatprep.subr.mxu0 0.0
    %631 = vmatpush1.msra.mxu0 0.0
    %632 = vmatprep.subr.mxu0 0.0
    %633 = vmatpush1.msra.mxu0 0.0
    %634 = vmatprep.subr.mxu0 0.0
    %635 = vmatpush1.msra.mxu0 0.0
    %636 = vmatprep.subr.mxu0 0.0
    %637 = vmatpush1.msra.mxu0 0.0
    %638 = vmatprep.subr.mxu0 0.0
    %639 = vmatpush1.msra.mxu0 0.0
    %640 = vmatprep.mubr.f32.mxu0 0.0
    %v641 = vand.u32 %v259, 4294901760
    %642 = vmatmul.mubr.f32.gmra.mrb[0].mxu0 %v641
    %v643 = vpop.f32.mrb[0].mxu0
    %v644 = vadd.f32 %v567, %v643
    %v645 = vpop.f32.mrb[0].mxu0
    %646 = vdwg.mxu0
    %647 = vmatprep.subr.mxu0 0.0
    %v648 = vand.u32 %v249, 4294901760
    %649 = vmatpush1.msra.mxu0 %v648
    %650 = vmatprep.subr.mxu0 0.0
    %v651 = vand.u32 %v256, 4294901760
    %652 = vmatpush1.msra.mxu0 %v651
    %653 = vmatprep.subr.mxu0 0.0
    %654 = vmatpush1.msra.mxu0 0.0
    %655 = vmatprep.subr.mxu0 0.0
    %656 = vmatpush1.msra.mxu0 0.0
    %657 = vmatprep.subr.mxu0 0.0
    %658 = vmatpush1.msra.mxu0 0.0
    %659 = vmatprep.subr.mxu0 0.0
    %660 = vmatpush1.msra.mxu0 0.0
    %661 = vmatprep.subr.mxu0 0.0
    %662 = vmatpush1.msra.mxu0 0.0
    %663 = vmatprep.subr.mxu0 0.0
    %664 = vmatpush1.msra.mxu0 0.0
    %665 = vmatprep.subr.mxu0 0.0
    %666 = vmatpush1.msra.mxu0 0.0
    %667 = vmatprep.subr.mxu0 0.0
    %668 = vmatpush1.msra.mxu0 0.0
    %669 = vmatprep.subr.mxu0 0.0
    %670 = vmatpush1.msra.mxu0 0.0
    %671 = vmatprep.subr.mxu0 0.0
    %672 = vmatpush1.msra.mxu0 0.0
    %673 = vmatprep.subr.mxu0 0.0
    %674 = vmatpush1.msra.mxu0 0.0
    %675 = vmatprep.subr.mxu0 0.0
    %676 = vmatpush1.msra.mxu0 0.0
    %677 = vmatprep.subr.mxu0 0.0
    %678 = vmatpush1.msra.mxu0 0.0
    %679 = vmatprep.subr.mxu0 0.0
    %680 = vmatpush1.msra.mxu0 0.0
    %681 = vmatprep.subr.mxu0 0.0
    %682 = vmatpush1.msra.mxu0 0.0
    %683 = vmatprep.subr.mxu0 0.0
    %684 = vmatpush1.msra.mxu0 0.0
    %685 = vmatprep.subr.mxu0 0.0
    %686 = vmatpush1.msra.mxu0 0.0
    %687 = vmatprep.subr.mxu0 0.0
    %688 = vmatpush1.msra.mxu0 0.0
    %689 = vmatprep.subr.mxu0 0.0
    %690 = vmatpush1.msra.mxu0 0.0
    %691 = vmatprep.subr.mxu0 0.0
    %692 = vmatpush1.msra.mxu0 0.0
    %693 = vmatprep.subr.mxu0 0.0
    %694 = vmatpush1.msra.mxu0 0.0
    %695 = vmatprep.subr.mxu0 0.0
    %696 = vmatpush1.msra.mxu0 0.0
    %697 = vmatprep.subr.mxu0 0.0
    %698 = vmatpush1.msra.mxu0 0.0
    %699 = vmatprep.subr.mxu0 0.0
    %700 = vmatpush1.msra.mxu0 0.0
    %701 = vmatprep.subr.mxu0 0.0
    %702 = vmatpush1.msra.mxu0 0.0
    %703 = vmatprep.subr.mxu0 0.0
    %704 = vmatpush1.msra.mxu0 0.0
    %705 = vmatprep.subr.mxu0 0.0
    %706 = vmatpush1.msra.mxu0 0.0
    %707 = vmatprep.subr.mxu0 0.0
    %708 = vmatpush1.msra.mxu0 0.0
    %709 = vmatprep.subr.mxu0 0.0
    %710 = vmatpush1.msra.mxu0 0.0
    %711 = vmatprep.subr.mxu0 0.0
    %712 = vmatpush1.msra.mxu0 0.0
    %713 = vmatprep.mubr.f32.mxu0 0.0
    %v714 = vand.u32 %v259, 4294901760
    %715 = vmatmul.mubr.f32.gmra.mrb[0].mxu0 %v714
    %v716 = vpop.f32.mrb[0].mxu0
    %v717 = vadd.f32 %v644, %v716
    %v718 = vpop.f32.mrb[0].mxu0
    %719 = vdwg.mxu0
    %720 = vst [vmem:[#allocation3] sm:$0xf] %v717
    %v721 = vld [vmem:[%s6] sm:$0x1]
    %v722 = vld [vmem:[#allocation2] sm:$0x1]
    %724 = vset.pattern.permute.xlu0 0
    %725 = vperm.xlu0 %724, %v722
    %v726 = vpop.permute.xlu0 %725
    %v728 = vlaneseq
    %v729 = vshrl.u32 %v728, 7
    %v730 = vsub.s32 0, %v729
    %v731 = vrot.slane %v726, %v730
    %v733 = vsel %vm139, %v721, 0
    %v736 = vsel %vm146, %v717, 0
    %738 = vmatprep.subr.mxu0 0.0
    %739 = vmatpush1.msra.mxu0 %v736
    %740 = vmatprep.subr.mxu0 0.0
    %741 = vmatpush1.msra.mxu0 0.0
    %742 = vmatprep.subr.mxu0 0.0
    %743 = vmatpush1.msra.mxu0 0.0
    %744 = vmatprep.subr.mxu0 0.0
    %745 = vmatpush1.msra.mxu0 0.0
    %746 = vmatprep.subr.mxu0 0.0
    %747 = vmatpush1.msra.mxu0 0.0
    %748 = vmatprep.subr.mxu0 0.0
    %749 = vmatpush1.msra.mxu0 0.0
    %750 = vmatprep.subr.mxu0 0.0
    %751 = vmatpush1.msra.mxu0 0.0
    %752 = vmatprep.subr.mxu0 0.0
    %753 = vmatpush1.msra.mxu0 0.0
    %754 = vmatprep.subr.mxu0 0.0
    %755 = vmatpush1.msra.mxu0 0.0
    %756 = vmatprep.subr.mxu0 0.0
    %757 = vmatpush1.msra.mxu0 0.0
    %758 = vmatprep.subr.mxu0 0.0
    %759 = vmatpush1.msra.mxu0 0.0
    %760 = vmatprep.subr.mxu0 0.0
    %761 = vmatpush1.msra.mxu0 0.0
    %762 = vmatprep.subr.mxu0 0.0
    %763 = vmatpush1.msra.mxu0 0.0
    %764 = vmatprep.subr.mxu0 0.0
    %765 = vmatpush1.msra.mxu0 0.0
    %766 = vmatprep.subr.mxu0 0.0
    %767 = vmatpush1.msra.mxu0 0.0
    %768 = vmatprep.subr.mxu0 0.0
    %769 = vmatpush1.msra.mxu0 0.0
    %770 = vmatprep.subr.mxu0 0.0
    %771 = vmatpush1.msra.mxu0 0.0
    %772 = vmatprep.subr.mxu0 0.0
    %773 = vmatpush1.msra.mxu0 0.0
    %774 = vmatprep.subr.mxu0 0.0
    %775 = vmatpush1.msra.mxu0 0.0
    %776 = vmatprep.subr.mxu0 0.0
    %777 = vmatpush1.msra.mxu0 0.0
    %778 = vmatprep.subr.mxu0 0.0
    %779 = vmatpush1.msra.mxu0 0.0
    %780 = vmatprep.subr.mxu0 0.0
    %781 = vmatpush1.msra.mxu0 0.0
    %782 = vmatprep.subr.mxu0 0.0
    %783 = vmatpush1.msra.mxu0 0.0
    %784 = vmatprep.subr.mxu0 0.0
    %785 = vmatpush1.msra.mxu0 0.0
    %786 = vmatprep.subr.mxu0 0.0
    %787 = vmatpush1.msra.mxu0 0.0
    %788 = vmatprep.subr.mxu0 0.0
    %789 = vmatpush1.msra.mxu0 0.0
    %790 = vmatprep.subr.mxu0 0.0
    %791 = vmatpush1.msra.mxu0 0.0
    %792 = vmatprep.subr.mxu0 0.0
    %793 = vmatpush1.msra.mxu0 0.0
    %794 = vmatprep.subr.mxu0 0.0
    %795 = vmatpush1.msra.mxu0 0.0
    %796 = vmatprep.subr.mxu0 0.0
    %797 = vmatpush1.msra.mxu0 0.0
    %798 = vmatprep.subr.mxu0 0.0
    %799 = vmatpush1.msra.mxu0 0.0
    %800 = vmatprep.subr.mxu0 0.0
    %801 = vmatpush1.msra.mxu0 0.0
    %802 = vmatprep.mubr.f32.mxu0 0.0
    %803 = vmatmul.mubr.f32.gmra.mrb[0].mxu0 %v733
    %v804 = vpop.f32.mrb[0].mxu0
    %v805 = vadd.f32 %v731, %v804
    %v806 = vpop.f32.mrb[0].mxu0
    %807 = vdwg.mxu0
    %v808 = vtanh.pop %v805
    %v809 = vld [vmem:[%s7] sm:$0xf]
    %v810 = vld [vmem:[%s9] sm:$0xf]
    %812 = vset.pattern.permute.xlu0 0
    %813 = vperm.xlu0 %812, %v810
    %v814 = vpop.permute.xlu0 %813
    %vm816 = vcmask 7168
    %v818 = vsel %vm816, %v809, 0
    %vm820 = vcmask 1040384
    %v822 = vsel %vm820, %v808, 0
    %824 = vmatprep.subr.mxu0 0.0
    %825 = vmatpush1.msra.mxu0 %v822
    %826 = vmatprep.subr.mxu0 0.0
    %827 = vmatpush1.msra.mxu0 0.0
    %828 = vmatprep.subr.mxu0 0.0
    %829 = vmatpush1.msra.mxu0 0.0
    %830 = vmatprep.subr.mxu0 0.0
    %831 = vmatpush1.msra.mxu0 0.0
    %832 = vmatprep.subr.mxu0 0.0
    %833 = vmatpush1.msra.mxu0 0.0
    %834 = vmatprep.subr.mxu0 0.0
    %835 = vmatpush1.msra.mxu0 0.0
    %836 = vmatprep.subr.mxu0 0.0
    %837 = vmatpush1.msra.mxu0 0.0
    %838 = vmatprep.subr.mxu0 0.0
    %839 = vmatpush1.msra.mxu0 0.0
    %840 = vmatprep.subr.mxu0 0.0
    %841 = vmatpush1.msra.mxu0 0.0
    %842 = vmatprep.subr.mxu0 0.0
    %843 = vmatpush1.msra.mxu0 0.0
    %844 = vmatprep.subr.mxu0 0.0
    %845 = vmatpush1.msra.mxu0 0.0
    %846 = vmatprep.subr.mxu0 0.0
    %847 = vmatpush1.msra.mxu0 0.0
    %848 = vmatprep.subr.mxu0 0.0
    %849 = vmatpush1.msra.mxu0 0.0
    %850 = vmatprep.subr.mxu0 0.0
    %851 = vmatpush1.msra.mxu0 0.0
    %852 = vmatprep.subr.mxu0 0.0
    %853 = vmatpush1.msra.mxu0 0.0
    %854 = vmatprep.subr.mxu0 0.0
    %855 = vmatpush1.msra.mxu0 0.0
    %856 = vmatprep.subr.mxu0 0.0
    %857 = vmatpush1.msra.mxu0 0.0
    %858 = vmatprep.subr.mxu0 0.0
    %859 = vmatpush1.msra.mxu0 0.0
    %860 = vmatprep.subr.mxu0 0.0
    %861 = vmatpush1.msra.mxu0 0.0
    %862 = vmatprep.subr.mxu0 0.0
    %863 = vmatpush1.msra.mxu0 0.0
    %864 = vmatprep.subr.mxu0 0.0
    %865 = vmatpush1.msra.mxu0 0.0
    %866 = vmatprep.subr.mxu0 0.0
    %867 = vmatpush1.msra.mxu0 0.0
    %868 = vmatprep.subr.mxu0 0.0
    %869 = vmatpush1.msra.mxu0 0.0
    %870 = vmatprep.subr.mxu0 0.0
    %871 = vmatpush1.msra.mxu0 0.0
    %872 = vmatprep.subr.mxu0 0.0
    %873 = vmatpush1.msra.mxu0 0.0
    %874 = vmatprep.subr.mxu0 0.0
    %875 = vmatpush1.msra.mxu0 0.0
    %876 = vmatprep.subr.mxu0 0.0
    %877 = vmatpush1.msra.mxu0 0.0
    %878 = vmatprep.subr.mxu0 0.0
    %879 = vmatpush1.msra.mxu0 0.0
    %880 = vmatprep.subr.mxu0 0.0
    %881 = vmatpush1.msra.mxu0 0.0
    %882 = vmatprep.subr.mxu0 0.0
    %883 = vmatpush1.msra.mxu0 0.0
    %884 = vmatprep.subr.mxu0 0.0
    %885 = vmatpush1.msra.mxu0 0.0
    %886 = vmatprep.subr.mxu0 0.0
    %887 = vmatpush1.msra.mxu0 0.0
    %888 = vmatprep.mubr.f32.mxu0 0.0
    %889 = vmatmul.mubr.f32.gmra.mrb[0].mxu0 %v818
    %v890 = vpop.f32.mrb[0].mxu0
    %v891 = vadd.f32 %v814, %v890
    %v892 = vpop.f32.mrb[0].mxu0
    %893 = vdwg.mxu0
    %v894 = vxor.u32 %v891, 2147483648
    %v895 = vmul.f32 %v894, 1.442695
    %v896 = vpow.pop %v895
    %v897 = vadd.f32 %v896, 1.0
    %v898 = vrcp.pop %v897
    %v899 = vmul.f32 1.0, %v898
    %v900 = vsub.f32 %v899, %v717
    %v901 = vmul.f32 %v900, %v900
    %v902 = vadd.f32 %v901, 1e-07
    %v903 = vrsqrt.pop %v902
    %v904 = vmul.f32 %v902, %v903
    %vm905 = vcmp.eq.f32.partialorder %v902, inf
    %v906 = vsel %vm905, %v902, %v904
    %vm907 = vcmp.eq.f32.partialorder %v902, 0.0
    %v908 = vand.u32 %v902, 2147483648
    %v909 = vsel %vm907, %v908, %v906
    %v910 = vsel %vm146, %v909, 0.0
    %v911 = vrot.slane %v910, 4
    %v912 = vadd.f32 %v910, %v911
    %v913 = vrot.slane %v912, 2
    %v914 = vadd.f32 %v912, %v913
    %v915 = vrot.slane %v914, 1
    %v916 = vadd.f32 %v914, %v915
    %v917 = vmul.f32 %v916, 0.25
    %918 = vst [vmem:[#allocation5] sm:$0x1] %v917
    // Predicated region
    $region42: #{tpu_custom_call.1} parent=1 // pred_check
      _
    $region43: #{tpu_custom_call.1} parent=1 // pred_check_branch
      %920 = sbr.rel (0) target = $region45
    $region44: #{tpu_custom_call.1} parent=1 // pred_region
      %s922 = ssub.s32 64, 64
      %923 = vsyncadd [#allocation4], %s922
      %s925 = sshll.u32 [#allocation3], 4
      %s926 = int_to_ptr.vmem [resolvable:$true] %s925
      %928 = dma.vmem_to_hbm [thread:$0]  %s926, 64, %s10, [#allocation4]
    $region45: #{tpu_custom_call.1} parent=1 // pred_fallthru
      _
    // Predicated region
    $region46: #{tpu_custom_call.1} parent=1 // pred_check
      _
    $region47: #{tpu_custom_call.1} parent=1 // pred_check_branch
      %930 = sbr.rel (0) target = $region49
    $region48: #{tpu_custom_call.1} parent=1 // pred_region
      %s932 = ssub.s32 16, 16
      %933 = vsyncadd [#allocation6], %s932
      %s935 = sshll.u32 [#allocation5], 4
      %s936 = int_to_ptr.vmem [resolvable:$true] %s935
      %938 = dma.vmem_to_hbm [thread:$0]  %s936, 16, %s11, [#allocation6]
    $region49: #{tpu_custom_call.1} parent=1 // pred_fallthru
      _
    // Predicated region
    $region50: #{tpu_custom_call.1} parent=1 // pred_check
      _
    $region51: #{tpu_custom_call.1} parent=1 // pred_check_branch
      %940 = sbr.rel (0) target = $region53
    $region52: #{tpu_custom_call.1} parent=1 // pred_region
      %941 = dma.done [#allocation4], 64
    $region53: #{tpu_custom_call.1} parent=1 // pred_fallthru
      _
    // Predicated region
    $region54: #{tpu_custom_call.1} parent=1 // pred_check
      _
    $region55: #{tpu_custom_call.1} parent=1 // pred_check_branch
      %943 = sbr.rel (0) target = $region57
    $region56: #{tpu_custom_call.1} parent=1 // pred_region
      %944 = dma.done [#allocation6], 16
    $region57: #{tpu_custom_call.1} parent=1 // pred_fallthru
      _
    %945 = vsyncpa [#allocation4], 1
    %946 = vsyncpa [#allocation6], 1

</llo_original>
